<compile_context>
chip_gen: v7x
topology: tpu7x:2x2x1
jax: 0.10.0
libtpu: 0.0.40
codegen_flags: <defaults>
</compile_context>

<pallas_src>
from functools import partial

import jax
import jax.numpy as jnp
from jax.experimental import pallas as pl
from jax.experimental.pallas import tpu as pltpu

LANE = 128


def _critic_kernel(state_ref, action_ref, w1s_ref, w1a_ref, w2_ref, aux_ref, o_ref,
                   *, bf16_epilogue):
    """One batch tile: (TB, Ds)+(TB, Da) -> (1, TB) value (batch on lanes)."""
    cd = w1s_ref.dtype                            # compute dtype (bf16), pre-cast weights
    s = state_ref[...].astype(cd)                 # (TB, Ds)  (no-op if inputs already bf16)
    a = action_ref[...].astype(cd)                # (TB, Da)

    b1 = aux_ref[0:1, :]                          # (1, Hp)  f32
    b2 = aux_ref[1:2, :]                          # (1, Hp)  f32
    w3 = aux_ref[2:3, :]                          # (1, Hp)  f32
    b3 = aux_ref[3:4, 0:1]                        # (1, 1)   f32

    # Layer 1: concat folded into two matmuls; MXU bf16 operands, f32 accumulation.
    h1 = jnp.dot(s, w1s_ref[...], preferred_element_type=jnp.float32)
    h1 = h1 + jnp.dot(a, w1a_ref[...], preferred_element_type=jnp.float32)
    if bf16_epilogue:                             # v6e/v7x: packed-bf16 VPU epilogue
        h1 = jnp.maximum(h1.astype(cd) + b1.astype(cd), 0.0)      # (TB, Hp) bf16
    else:                                         # v5e: no bf16 VPU -> f32 epilogue
        h1 = jnp.maximum(h1 + b1, 0.0).astype(cd)                 # (TB, Hp) bf16

    # Layer 2.
    h2 = jnp.dot(h1, w2_ref[...], preferred_element_type=jnp.float32)
    if bf16_epilogue:
        h2 = jnp.maximum(h2.astype(cd) + b2.astype(cd), 0.0)
    else:
        h2 = jnp.maximum(h2 + b2, 0.0).astype(cd)

    # Layer 3: (1,Hp) x (TB,Hp)^T -> (1, TB). Batch ends up on lanes, so the output
    # store is lane-dense. (Per review: verified formulation keeps per-lane row
    # independence; XLU has slack here even if Mosaic materializes a transpose.)
    v = jnp.einsum("xh,bh->xb", w3.astype(cd), h2,
                   preferred_element_type=jnp.float32)
    o_ref[...] = (v + b3).astype(o_ref.dtype)


def _choose_tb(batch, block_b):
    """Batch tile: multiple of 128 when possible; >=2 grid steps once B >= 256 so a
    v7x megacore can split the 'parallel' batch axis across both TensorCores."""
    assert block_b % LANE == 0 and block_b >= LANE, "block_b must be a multiple of 128"
    if batch <= LANE:
        return batch                         # single full block (full-dim exemption)
    if batch < 2 * LANE:
        return LANE                          # 2 steps, last one partial
    half = pl.cdiv(pl.cdiv(batch, 2), LANE) * LANE
    return min(block_b, half)


def _default_bf16_epilogue():
    """bf16 bias/ReLU epilogue only where the VPU has native bf16 (not v5-class)."""
    try:
        kind = jax.devices()[0].device_kind.lower()
    except Exception:
        return False
    return "v5" not in kind


def critic_forward(state, action, packed_params, *, block_b=1024, bf16_epilogue=None):
    """Pallas implementation of CriticNetwork.forward(state, action) -> (B, 1)."""
    if bf16_epilogue is None:
        bf16_epilogue = _default_bf16_epilogue()
    w1s, w1a, w2, aux = packed_params
    B, Ds = state.shape
    Da = action.shape[1]

    tb = _choose_tb(B, block_b)
    nb = pl.cdiv(B, tb)
    # No wrapper-side padding for ragged B: Pallas clips the last (partial) block's
    # input DMA and output writeback; garbage rows only ever touch garbage lanes
    # because every output lane depends on exactly one batch row.

    out = pl.pallas_call(
        partial(_critic_kernel, bf16_epilogue=bf16_epilogue),
        out_shape=jax.ShapeDtypeStruct((1, B), jnp.float32),
        grid=(nb,),
        in_specs=[
            pl.BlockSpec((tb, Ds), lambda i: (i, 0)),      # state tile (streamed)
            pl.BlockSpec((tb, Da), lambda i: (i, 0)),      # action tile (streamed)
            pl.BlockSpec(w1s.shape, lambda i: (0, 0)),     # weights: VMEM-resident, bf16
            pl.BlockSpec(w1a.shape, lambda i: (0, 0)),
            pl.BlockSpec(w2.shape, lambda i: (0, 0)),
            pl.BlockSpec(aux.shape, lambda i: (0, 0)),     # [b1; b2; w3; b3] f32 tile
        ],
        out_specs=pl.BlockSpec((1, tb), lambda i: (0, i)), # lane-dense value output
        compiler_params=pltpu.CompilerParams(dimension_semantics=("parallel",)),
    )(state, action, w1s, w1a, w2, aux)

    return out.reshape(B, 1)


def init_params(key, state_dim, action_dim, hidden_size):
    """PyTorch nn.Linear-style init (U[-1/sqrt(fan_in), +1/sqrt(fan_in)]), torch layout."""
    d_in = state_dim + action_dim
    ks = jax.random.split(key, 6)

    def lin(kw, kb, fan_in, fan_out):
        bound = 1.0 / (fan_in ** 0.5)
        w = jax.random.uniform(kw, (fan_in, fan_out), jnp.float32, -bound, bound)
        b = jax.random.uniform(kb, (fan_out,), jnp.float32, -bound, bound)
        return w, b

    w1, b1 = lin(ks[0], ks[1], d_in, hidden_size)
    w2, b2 = lin(ks[2], ks[3], hidden_size, hidden_size)
    w3, b3 = lin(ks[4], ks[5], hidden_size, 1)
    return (w1, b1, w2, b2, w3, b3)


def pack_params(params, state_dim, action_dim, lane=LANE, compute_dtype=jnp.bfloat16):
    """One-time repack: split w1 (folds the concat), zero-pad the hidden dim to the
    lane width, pre-cast the large weights to bf16, and stack the small (1,H)/(1,1)
    tensors into a single f32 (4, Hp) tile."""
    w1, b1, w2, b2, w3, b3 = params
    assert w1.shape[0] == state_dim + action_dim
    H = w2.shape[0]
    Hp = -(-H // lane) * lane

    pad_cols = lambda x: jnp.pad(x, ((0, 0), (0, Hp - x.shape[-1])))
    w1s = pad_cols(w1[:state_dim]).astype(compute_dtype)      # (Ds, Hp) bf16
    w1a = pad_cols(w1[state_dim:]).astype(compute_dtype)      # (Da, Hp) bf16
    w2p = jnp.pad(w2, ((0, Hp - H), (0, Hp - H))).astype(compute_dtype)  # (Hp, Hp) bf16
    aux = jnp.stack([
        jnp.pad(b1, (0, Hp - H)),                             # row 0: b1
        jnp.pad(b2, (0, Hp - H)),                             # row 1: b2
        jnp.pad(w3[:, 0], (0, Hp - H)),                       # row 2: w3 (as a row)
        jnp.pad(b3, (0, Hp - 1)),                             # row 3: [b3, 0, ...]
    ], axis=0).astype(jnp.float32)                            # (4, Hp) f32
    return (w1s, w1a, w2p, aux)


def ref_forward(state, action, packed, *, bf16_epilogue):
    """Plain-JAX reference mirroring the kernel's mixed precision exactly."""
    w1s, w1a, w2, aux = packed
    cd = w1s.dtype
    b1, b2, w3, b3 = aux[0], aux[1], aux[2], aux[3, 0]
    s = state.astype(cd)
    a = action.astype(cd)

    h1 = (jnp.dot(s, w1s, preferred_element_type=jnp.float32)
          + jnp.dot(a, w1a, preferred_element_type=jnp.float32))
    if bf16_epilogue:
        h1 = jnp.maximum(h1.astype(cd) + b1.astype(cd), 0.0)
    else:
        h1 = jnp.maximum(h1 + b1, 0.0).astype(cd)

    h2 = jnp.dot(h1, w2, preferred_element_type=jnp.float32)
    if bf16_epilogue:
        h2 = jnp.maximum(h2.astype(cd) + b2.astype(cd), 0.0)
    else:
        h2 = jnp.maximum(h2 + b2, 0.0).astype(cd)

    v = jnp.dot(h2, w3.astype(cd), preferred_element_type=jnp.float32) + b3
    return v[:, None]                                         # (B, 1)


if __name__ == "__main__":
    key = jax.random.PRNGKey(0)
    k_s1, k_a1, k_params, k_s2, k_a2 = jax.random.split(key, 5)

    state_dim, action_dim, hidden_size = 12, 4, 32
    params = init_params(k_params, state_dim, action_dim, hidden_size)
    packed = pack_params(params, state_dim, action_dim)

    bf16_epi = _default_bf16_epilogue()
    # Mirrored-reference tolerance: the bf16 epilogue can flip a bf16 ulp if MXU/XLA
    # accumulation orders differ, so use a slightly looser bound on that path.
    tol = 5e-3 if bf16_epi else 1e-4

    # --- small batch (single tile) ---
    B = 8
    state = jax.random.normal(k_s1, (B, state_dim), jnp.float32)
    action = jax.random.normal(k_a1, (B, action_dim), jnp.float32)
    value = critic_forward(state, action, packed, bf16_epilogue=bf16_epi)
    jax.block_until_ready(value)
    assert value.shape == (B, 1)
    ref = ref_forward(state, action, packed, bf16_epilogue=bf16_epi)
    assert jnp.allclose(value, ref, atol=tol, rtol=tol)

    # sanity check against the exact f32 PyTorch-module math (bf16 MXU operands -> loose tol)
    w1, b1, w2, b2, w3, b3 = params
    x = jnp.concatenate([state, action], axis=-1)
    f32_ref = jnp.maximum(jnp.maximum(x @ w1 + b1, 0.0) @ w2 + b2, 0.0) @ w3 + b3
    assert jnp.allclose(value, f32_ref, atol=5e-2)

    # --- larger, ragged batch (multi-step grid + partial-last-block path, no wrapper pad) ---
    B2 = 300
    state2 = jax.random.normal(k_s2, (B2, state_dim), jnp.float32)
    action2 = jax.random.normal(k_a2, (B2, action_dim), jnp.float32)
    value2 = critic_forward(state2, action2, packed, bf16_epilogue=bf16_epi)
    jax.block_until_ready(value2)
    assert value2.shape == (B2, 1)
    ref2 = ref_forward(state2, action2, packed, bf16_epilogue=bf16_epi)
    assert jnp.allclose(value2, ref2, atol=tol, rtol=tol)

    print("KERNEL_OK")
</pallas_src>

<mosaic_0001>
module attributes {stable_mosaic.version = 11 : i64} {
  func.func @_critic_kernel(%arg0: i32, %arg1: memref<8x12xf32, #tpu.memory_space<vmem>>, %arg2: memref<8x4xf32, #tpu.memory_space<vmem>>, %arg3: memref<12x128xbf16, #tpu.memory_space<vmem>>, %arg4: memref<4x128xbf16, #tpu.memory_space<vmem>>, %arg5: memref<128x128xbf16, #tpu.memory_space<vmem>>, %arg6: memref<4x128xf32, #tpu.memory_space<vmem>>, %arg7: memref<1x8xf32, #tpu.memory_space<vmem>>) attributes {dimension_semantics = [#tpu.dimension_semantics<parallel>], iteration_bounds = array<i64: 1>, scalar_prefetch = 0 : i64, scratch_operands = 0 : i64, tpu.core_type = #tpu.core_type<tc>, window_params = [{transform_indices = @transform_0, window_bounds = array<i64: 8, 12>}, {transform_indices = @transform_1, window_bounds = array<i64: 8, 4>}, {pipeline_mode = #tpu.pipeline_mode<synchronous>, transform_indices = @transform_2, window_bounds = array<i64: 12, 128>}, {pipeline_mode = #tpu.pipeline_mode<synchronous>, transform_indices = @transform_3, window_bounds = array<i64: 4, 128>}, {pipeline_mode = #tpu.pipeline_mode<synchronous>, transform_indices = @transform_4, window_bounds = array<i64: 128, 128>}, {pipeline_mode = #tpu.pipeline_mode<synchronous>, transform_indices = @transform_5, window_bounds = array<i64: 4, 128>}, {transform_indices = @transform_6, window_bounds = array<i64: 1, 8>}]} {
    %c0 = arith.constant 0 : index
    %c0_0 = arith.constant 0 : index
    %0 = vector.load %arg1[%c0, %c0_0] : memref<8x12xf32, #tpu.memory_space<vmem>>, vector<8x12xf32>
    %1 = arith.truncf %0 : vector<8x12xf32> to vector<8x12xbf16>
    %c0_1 = arith.constant 0 : index
    %c0_2 = arith.constant 0 : index
    %2 = vector.load %arg2[%c0_1, %c0_2] : memref<8x4xf32, #tpu.memory_space<vmem>>, vector<8x4xf32>
    %3 = arith.truncf %2 : vector<8x4xf32> to vector<8x4xbf16>
    %c0_3 = arith.constant 0 : index
    %c0_4 = arith.constant 0 : index
    %4 = vector.load %arg6[%c0_3, %c0_4] : memref<4x128xf32, #tpu.memory_space<vmem>>, vector<1x128xf32>
    %c1 = arith.constant 1 : index
    %c0_5 = arith.constant 0 : index
    %5 = vector.load %arg6[%c1, %c0_5] : memref<4x128xf32, #tpu.memory_space<vmem>>, vector<1x128xf32>
    %c2 = arith.constant 2 : index
    %c0_6 = arith.constant 0 : index
    %6 = vector.load %arg6[%c2, %c0_6] : memref<4x128xf32, #tpu.memory_space<vmem>>, vector<1x128xf32>
    %c3 = arith.constant 3 : index
    %c0_7 = arith.constant 0 : index
    %7 = vector.load %arg6[%c3, %c0_7] : memref<4x128xf32, #tpu.memory_space<vmem>>, vector<1x1xf32>
    %c0_8 = arith.constant 0 : index
    %c0_9 = arith.constant 0 : index
    %8 = vector.load %arg3[%c0_8, %c0_9] : memref<12x128xbf16, #tpu.memory_space<vmem>>, vector<12x128xbf16>
    %cst = arith.constant dense<0.000000e+00> : vector<8x128xf32>
    %9 = tpu.matmul %1, %8, %cst {dimension_numbers = #tpu.dot_dimension_numbers<[1], [0], [0], [1], [0, 0, 1, 1], [], []>} : vector<8x12xbf16>, vector<12x128xbf16>, vector<8x128xf32> -> vector<8x128xf32>
    %c0_10 = arith.constant 0 : index
    %c0_11 = arith.constant 0 : index
    %10 = vector.load %arg4[%c0_10, %c0_11] : memref<4x128xbf16, #tpu.memory_space<vmem>>, vector<4x128xbf16>
    %cst_12 = arith.constant dense<0.000000e+00> : vector<8x128xf32>
    %11 = tpu.matmul %3, %10, %cst_12 {dimension_numbers = #tpu.dot_dimension_numbers<[1], [0], [0], [1], [0, 0, 1, 1], [], []>} : vector<8x4xbf16>, vector<4x128xbf16>, vector<8x128xf32> -> vector<8x128xf32>
    %12 = arith.addf %9, %11 : vector<8x128xf32>
    %13 = arith.truncf %12 : vector<8x128xf32> to vector<8x128xbf16>
    %14 = arith.truncf %4 : vector<1x128xf32> to vector<1x128xbf16>
    %15 = vector.broadcast %14 : vector<1x128xbf16> to vector<8x128xbf16>
    %16 = arith.addf %13, %15 : vector<8x128xbf16>
    %cst_13 = arith.constant 0.000000e+00 : bf16
    %17 = vector.broadcast %cst_13 : bf16 to vector<8x128xbf16>
    %18 = arith.maximumf %16, %17 : vector<8x128xbf16>
    %c0_14 = arith.constant 0 : index
    %c0_15 = arith.constant 0 : index
    %19 = vector.load %arg5[%c0_14, %c0_15] : memref<128x128xbf16, #tpu.memory_space<vmem>>, vector<128x128xbf16>
    %cst_16 = arith.constant dense<0.000000e+00> : vector<8x128xf32>
    %20 = tpu.matmul %18, %19, %cst_16 {dimension_numbers = #tpu.dot_dimension_numbers<[1], [0], [0], [1], [0, 0, 1, 1], [], []>} : vector<8x128xbf16>, vector<128x128xbf16>, vector<8x128xf32> -> vector<8x128xf32>
    %21 = arith.truncf %20 : vector<8x128xf32> to vector<8x128xbf16>
    %22 = arith.truncf %5 : vector<1x128xf32> to vector<1x128xbf16>
    %23 = vector.broadcast %22 : vector<1x128xbf16> to vector<8x128xbf16>
    %24 = arith.addf %21, %23 : vector<8x128xbf16>
    %cst_17 = arith.constant 0.000000e+00 : bf16
    %25 = vector.broadcast %cst_17 : bf16 to vector<8x128xbf16>
    %26 = arith.maximumf %24, %25 : vector<8x128xbf16>
    %27 = arith.truncf %6 : vector<1x128xf32> to vector<1x128xbf16>
    "tpu.trace_start"() <{level = 10 : i32, message = "xh,bh->xb"}> : () -> ()
    %cst_18 = arith.constant dense<0.000000e+00> : vector<1x8xf32>
    %28 = tpu.matmul %27, %26, %cst_18 {dimension_numbers = #tpu.dot_dimension_numbers<[1], [1], [0], [0], [0, 0, 1, 0], [], []>} : vector<1x128xbf16>, vector<8x128xbf16>, vector<1x8xf32> -> vector<1x8xf32>
    "tpu.trace_stop"() : () -> ()
    %29 = vector.broadcast %7 : vector<1x1xf32> to vector<1x8xf32>
    %30 = arith.addf %28, %29 : vector<1x8xf32>
    %c0_19 = arith.constant 0 : index
    %c0_20 = arith.constant 0 : index
    %31 = vector.load %arg7[%c0_19, %c0_20] : memref<1x8xf32, #tpu.memory_space<vmem>>, vector<1x8xf32>
    tpu.vector_store %arg7[%c0_19, %c0_20], %30 {strides = array<i32>} : memref<1x8xf32, #tpu.memory_space<vmem>>, vector<1x8xf32>,
    return
  }
  func.func @transform_0(%arg0: i32) -> (i32, i32) {
    %c0_i32 = arith.constant 0 : i32
    %c0_i32_0 = arith.constant 0 : i32
    return %arg0, %c0_i32 : i32, i32
  }
  func.func @transform_1(%arg0: i32) -> (i32, i32) {
    %c0_i32 = arith.constant 0 : i32
    %c0_i32_0 = arith.constant 0 : i32
    return %arg0, %c0_i32 : i32, i32
  }
  func.func @transform_2(%arg0: i32) -> (i32, i32) {
    %c0_i32 = arith.constant 0 : i32
    %c0_i32_0 = arith.constant 0 : i32
    %c0_i32_1 = arith.constant 0 : i32
    return %c0_i32, %c0_i32_0 : i32, i32
  }
  func.func @transform_3(%arg0: i32) -> (i32, i32) {
    %c0_i32 = arith.constant 0 : i32
    %c0_i32_0 = arith.constant 0 : i32
    %c0_i32_1 = arith.constant 0 : i32
    return %c0_i32, %c0_i32_0 : i32, i32
  }
  func.func @transform_4(%arg0: i32) -> (i32, i32) {
    %c0_i32 = arith.constant 0 : i32
    %c0_i32_0 = arith.constant 0 : i32
    %c0_i32_1 = arith.constant 0 : i32
    return %c0_i32, %c0_i32_0 : i32, i32
  }
  func.func @transform_5(%arg0: i32) -> (i32, i32) {
    %c0_i32 = arith.constant 0 : i32
    %c0_i32_0 = arith.constant 0 : i32
    %c0_i32_1 = arith.constant 0 : i32
    return %c0_i32, %c0_i32_0 : i32, i32
  }
  func.func @transform_6(%arg0: i32) -> (i32, i32) {
    %c0_i32 = arith.constant 0 : i32
    %c0_i32_0 = arith.constant 0 : i32
    return %c0_i32, %arg0 : i32, i32
  }
}

</mosaic_0001>

<llo_original>
// kernel: tpu_custom_call.1
$region0: #{tpu_custom_call.1}
  #allocation0 [shape = 'u32[]', space=smem, size = 0x4, offset = 0x4, fixed_abs, tag = 'smem constant byte address 0x4 - core index']
  #allocation1 [shape = 'u32[144,128]{1,0:T(1,128)}', space=vmem, size = 0x12000, scoped, tag = 'internal scratch']
  %s0 = inlined_call_operand.vmem [shape: f32[8,12], index: 0, kind: input, shape index: {}]
  %s1 = inlined_call_operand.vmem [shape: f32[8,4], index: 1, kind: input, shape index: {}]
  %s2 = inlined_call_operand.vmem [shape: bf16[12,128], index: 2, kind: input, shape index: {}]
  %s3 = inlined_call_operand.vmem [shape: bf16[4,128], index: 3, kind: input, shape index: {}]
  %s4 = inlined_call_operand.hbm [shape: bf16[128,128], index: 4, kind: input, shape index: {}]
  %s5 = inlined_call_operand.vmem [shape: f32[4,128], index: 5, kind: input, shape index: {}]
  %s6 = inlined_call_operand.hbm [shape: f32[1,8], index: 6, kind: output, shape index: {}]
  %s7 = sld [smem:[#allocation0]]
  $region38: #{tpu_custom_call.1} parent=0
    _
  %s9 = ssub.s32 1, %s7
  %s10 = scalar_select 0, %s9, %s7
  $region1: #{tpu_custom_call.1} parent=0
    #allocation2 [shape = 'u8[32768]{0}', space=vmem, size = 0x8000, scoped, tag = 'input window, operand 4, single buffered']
    #allocation3 [shape = 's32[1]{0}', space=sflag, size = 0x4, scoped, tag = 'scoped memory for tpu_custom_call.1']
    #allocation4 [shape = 's32[1]{0}', space=sflag, size = 0x4, scoped, tag = 'scoped memory for tpu_custom_call.1']
    #allocation5 [shape = 'u8[512]{0}', space=vmem, size = 0x400, scoped, tag = 'output window, operand 0, single buffered']
    %11 = vsyncpa [#allocation3], 0
    %12 = vsyncpa [#allocation4], 0
    // Predicated region
    $region2: #{tpu_custom_call.1} parent=1 // pred_check
      _
    $region3: #{tpu_custom_call.1} parent=1 // pred_check_branch
      %14 = sbr.rel (0) target = $region5
    $region4: #{tpu_custom_call.1} parent=1 // pred_region
      _
    $region5: #{tpu_custom_call.1} parent=1 // pred_fallthru
      _
    // Predicated region
    $region6: #{tpu_custom_call.1} parent=1 // pred_check
      _
    $region7: #{tpu_custom_call.1} parent=1 // pred_check_branch
      %16 = sbr.rel (0) target = $region9
    $region8: #{tpu_custom_call.1} parent=1 // pred_region
      _
    $region9: #{tpu_custom_call.1} parent=1 // pred_fallthru
      _
    // Predicated region
    $region10: #{tpu_custom_call.1} parent=1 // pred_check
      _
    $region11: #{tpu_custom_call.1} parent=1 // pred_check_branch
      %18 = sbr.rel (0) target = $region13
    $region12: #{tpu_custom_call.1} parent=1 // pred_region
      _
    $region13: #{tpu_custom_call.1} parent=1 // pred_fallthru
      _
    // Predicated region
    $region14: #{tpu_custom_call.1} parent=1 // pred_check
      _
    $region15: #{tpu_custom_call.1} parent=1 // pred_check_branch
      %20 = sbr.rel (0) target = $region17
    $region16: #{tpu_custom_call.1} parent=1 // pred_region
      _
    $region17: #{tpu_custom_call.1} parent=1 // pred_fallthru
      _
    // Predicated region
    $region18: #{tpu_custom_call.1} parent=1 // pred_check
      _
    $region19: #{tpu_custom_call.1} parent=1 // pred_check_branch
      %22 = sbr.rel (0) target = $region21
    $region20: #{tpu_custom_call.1} parent=1 // pred_region
      %s24 = ssub.s32 1024, 1024
      %25 = vsyncadd [#allocation3], %s24
      %s26 = sshll.u32 [#allocation2], 4
      %s27 = int_to_ptr.vmem [resolvable:$true] %s26
      %32 = dma.hbm_to_vmem [thread:$0]  %s4, 1024, %s27, [#allocation3], 64, 64, 4
    $region21: #{tpu_custom_call.1} parent=1 // pred_fallthru
      _
    // Predicated region
    $region22: #{tpu_custom_call.1} parent=1 // pred_check
      _
    $region23: #{tpu_custom_call.1} parent=1 // pred_check_branch
      %34 = sbr.rel (0) target = $region25
    $region24: #{tpu_custom_call.1} parent=1 // pred_region
      _
    $region25: #{tpu_custom_call.1} parent=1 // pred_fallthru
      _
    // Predicated region
    $region26: #{tpu_custom_call.1} parent=1 // pred_check
      _
    $region27: #{tpu_custom_call.1} parent=1 // pred_check_branch
      %36 = sbr.rel (0) target = $region29
    $region28: #{tpu_custom_call.1} parent=1 // pred_region
      %37 = dma.done [#allocation3], 1024
    $region29: #{tpu_custom_call.1} parent=1 // pred_fallthru
      _
    %v39 = vld [vmem:[%s0] sm:$0xff]
    %v40 = vpack.c.bf16 %v39, %v39
    %v41 = vld [vmem:[%s1] sm:$0xff]
    %v42 = vpack.c.bf16 %v41, %v41
    %v43 = vld [vmem:[%s5] sm:$0x1]
    %v44 = vld [vmem:[%s5 + $0x1] sm:$0x1]
    %v45 = vld [vmem:[%s5 + $0x2] sm:$0x1]
    %v46 = vld [vmem:[%s5 + $0x3] sm:$0x1]
    %v47 = vld [vmem:[%s2] sm:$0xf]
    %v48 = vld [vmem:[%s2 + $0x4] sm:$0x3]
    %v49 = vld [vmem:[%s3] sm:$0x3]
    %vm50 = vcmask 31744
    %v52 = vsel %vm50, %v42, 0
    %vm54 = vcmask 1041408
    %v56 = vsel %vm54, %v49, 0
    %58 = vmatprep.subr.bf16.mxu0 0
    %59 = vmatpush1.bf16.msra.mxu0 %v56
    %60 = vmatprep.subr.bf16.mxu0 0
    %61 = vmatpush1.bf16.msra.mxu0 0
    %62 = vmatprep.subr.bf16.mxu0 0
    %63 = vmatpush1.bf16.msra.mxu0 0
    %64 = vmatprep.subr.bf16.mxu0 0
    %65 = vmatpush1.bf16.msra.mxu0 0
    %66 = vmatprep.subr.bf16.mxu0 0
    %67 = vmatpush1.bf16.msra.mxu0 0
    %68 = vmatprep.subr.bf16.mxu0 0
    %69 = vmatpush1.bf16.msra.mxu0 0
    %70 = vmatprep.subr.bf16.mxu0 0
    %71 = vmatpush1.bf16.msra.mxu0 0
    %72 = vmatprep.subr.bf16.mxu0 0
    %73 = vmatpush1.bf16.msra.mxu0 0
    %74 = vmatprep.subr.bf16.mxu0 0
    %75 = vmatpush1.bf16.msra.mxu0 0
    %76 = vmatprep.subr.bf16.mxu0 0
    %77 = vmatpush1.bf16.msra.mxu0 0
    %78 = vmatprep.subr.bf16.mxu0 0
    %79 = vmatpush1.bf16.msra.mxu0 0
    %80 = vmatprep.subr.bf16.mxu0 0
    %81 = vmatpush1.bf16.msra.mxu0 0
    %82 = vmatprep.subr.bf16.mxu0 0
    %83 = vmatpush1.bf16.msra.mxu0 0
    %84 = vmatprep.subr.bf16.mxu0 0
    %85 = vmatpush1.bf16.msra.mxu0 0
    %86 = vmatprep.subr.bf16.mxu0 0
    %87 = vmatpush1.bf16.msra.mxu0 0
    %88 = vmatprep.subr.bf16.mxu0 0
    %89 = vmatpush1.bf16.msra.mxu0 0
    %90 = vmatprep.mubr.bf16.mxu0 0
    %91 = vmatmul.mubr.bf16.gmra.mrb[0].mxu0 %v52
    %v92 = vpop.f32.mrb[0].mxu0
    %v93 = vadd.f32 0.0, %v92
    %v94 = vpop.f32.mrb[0].mxu0
    %v95 = vpop.f32.mrb[0].mxu0
    %v96 = vpop.f32.mrb[0].mxu0
    %97 = vdwg.mxu0
    %v100 = vunpack.c.l.b16 %v47
    %v101 = vunpack.c.l.b16 %v48
    %v102 = vpack.c.b16 %v101, %v100
    %vm103 = vcmask 97280
    %v105 = vsel %vm103, %v40, 0
    %vm107 = vcmask 1045504
    %v109 = vsel %vm107, %v102, 0
    %111 = vmatprep.subr.bf16.mxu0 0
    %112 = vmatpush1.bf16.msra.mxu0 %v109
    %113 = vmatprep.subr.bf16.mxu0 0
    %114 = vmatpush1.bf16.msra.mxu0 0
    %115 = vmatprep.subr.bf16.mxu0 0
    %116 = vmatpush1.bf16.msra.mxu0 0
    %117 = vmatprep.subr.bf16.mxu0 0
    %118 = vmatpush1.bf16.msra.mxu0 0
    %119 = vmatprep.subr.bf16.mxu0 0
    %120 = vmatpush1.bf16.msra.mxu0 0
    %121 = vmatprep.subr.bf16.mxu0 0
    %122 = vmatpush1.bf16.msra.mxu0 0
    %123 = vmatprep.subr.bf16.mxu0 0
    %124 = vmatpush1.bf16.msra.mxu0 0
    %125 = vmatprep.subr.bf16.mxu0 0
    %126 = vmatpush1.bf16.msra.mxu0 0
    %127 = vmatprep.subr.bf16.mxu0 0
    %128 = vmatpush1.bf16.msra.mxu0 0
    %129 = vmatprep.subr.bf16.mxu0 0
    %130 = vmatpush1.bf16.msra.mxu0 0
    %131 = vmatprep.subr.bf16.mxu0 0
    %132 = vmatpush1.bf16.msra.mxu0 0
    %133 = vmatprep.subr.bf16.mxu0 0
    %134 = vmatpush1.bf16.msra.mxu0 0
    %135 = vmatprep.subr.bf16.mxu0 0
    %136 = vmatpush1.bf16.msra.mxu0 0
    %137 = vmatprep.subr.bf16.mxu0 0
    %138 = vmatpush1.bf16.msra.mxu0 0
    %139 = vmatprep.subr.bf16.mxu0 0
    %140 = vmatpush1.bf16.msra.mxu0 0
    %141 = vmatprep.subr.bf16.mxu0 0
    %142 = vmatpush1.bf16.msra.mxu0 0
    %143 = vmatprep.mubr.bf16.mxu0 0
    %144 = vmatmul.mubr.bf16.gmra.mrb[0].mxu0 %v105
    %v145 = vpop.f32.mrb[0].mxu0
    %v146 = vadd.f32 %v93, %v145
    %v147 = vpop.f32.mrb[0].mxu0
    %v148 = vpop.f32.mrb[0].mxu0
    %v149 = vpop.f32.mrb[0].mxu0
    %150 = vdwg.mxu0
    %v151 = vpack.c.bf16 %v146, %v146
    %v152 = vpack.c.bf16 %v43, %v43
    %v154 = vpack.i.b16 %v152, %v152
    %v156 = vlaneseq
    %v157 = vshrl.u32 %v156, 7
    %v158 = vsub.s32 0, %v157
    %v159 = vrot.slane %v154, %v158
    %v160 = vadd.bf16 %v151, %v159
    %v161 = vmax.bf16 %v160, 0
    %v162 = vld [vmem:[#allocation2] sm:$0xf]
    %v163 = vld [vmem:[#allocation2 + $0x4] sm:$0xf]
    %v164 = vld [vmem:[#allocation2 + $0x8] sm:$0xf]
    %v165 = vld [vmem:[#allocation2 + $0xc] sm:$0xf]
    %v166 = vld [vmem:[#allocation2 + $0x10] sm:$0xf]
    %v167 = vld [vmem:[#allocation2 + $0x14] sm:$0xf]
    %v168 = vld [vmem:[#allocation2 + $0x18] sm:$0xf]
    %v169 = vld [vmem:[#allocation2 + $0x1c] sm:$0xf]
    %v170 = vld [vmem:[#allocation2 + $0x20] sm:$0xf]
    %v171 = vld [vmem:[#allocation2 + $0x24] sm:$0xf]
    %v172 = vld [vmem:[#allocation2 + $0x28] sm:$0xf]
    %v173 = vld [vmem:[#allocation2 + $0x2c] sm:$0xf]
    %v174 = vld [vmem:[#allocation2 + $0x30] sm:$0xf]
    %v175 = vld [vmem:[#allocation2 + $0x34] sm:$0xf]
    %v176 = vld [vmem:[#allocation2 + $0x38] sm:$0xf]
    %v177 = vld [vmem:[#allocation2 + $0x3c] sm:$0xf]
    %v194 = vunpack.c.l.b16 %v162
    %v195 = vunpack.c.l.b16 %v163
    %v196 = vunpack.c.l.b16 %v164
    %v197 = vunpack.c.l.b16 %v165
    %v198 = vunpack.c.l.b16 %v166
    %v199 = vunpack.c.l.b16 %v167
    %v200 = vunpack.c.l.b16 %v168
    %v201 = vunpack.c.l.b16 %v169
    %v202 = vunpack.c.l.b16 %v170
    %v203 = vunpack.c.l.b16 %v171
    %v204 = vunpack.c.l.b16 %v172
    %v205 = vunpack.c.l.b16 %v173
    %v206 = vunpack.c.l.b16 %v174
    %v207 = vunpack.c.l.b16 %v175
    %v208 = vunpack.c.l.b16 %v176
    %v209 = vunpack.c.l.b16 %v177
    %v210 = vpack.c.b16 %v195, %v194
    %v211 = vpack.c.b16 %v197, %v196
    %v212 = vpack.c.b16 %v199, %v198
    %v213 = vpack.c.b16 %v201, %v200
    %v214 = vpack.c.b16 %v203, %v202
    %v215 = vpack.c.b16 %v205, %v204
    %v216 = vpack.c.b16 %v207, %v206
    %v217 = vpack.c.b16 %v209, %v208
    %226 = vmatprep.subr.bf16.mxu0 0
    %227 = vmatpush1.bf16.msra.mxu0 %v210
    %228 = vmatprep.subr.bf16.mxu0 0
    %229 = vmatpush1.bf16.msra.mxu0 %v211
    %230 = vmatprep.subr.bf16.mxu0 0
    %231 = vmatpush1.bf16.msra.mxu0 %v212
    %232 = vmatprep.subr.bf16.mxu0 0
    %233 = vmatpush1.bf16.msra.mxu0 %v213
    %234 = vmatprep.subr.bf16.mxu0 0
    %235 = vmatpush1.bf16.msra.mxu0 %v214
    %236 = vmatprep.subr.bf16.mxu0 0
    %237 = vmatpush1.bf16.msra.mxu0 %v215
    %238 = vmatprep.subr.bf16.mxu0 0
    %239 = vmatpush1.bf16.msra.mxu0 %v216
    %240 = vmatprep.subr.bf16.mxu0 0
    %241 = vmatpush1.bf16.msra.mxu0 %v217
    %242 = vmatprep.subr.bf16.mxu0 0
    %243 = vmatpush1.bf16.msra.mxu0 0
    %244 = vmatprep.subr.bf16.mxu0 0
    %245 = vmatpush1.bf16.msra.mxu0 0
    %246 = vmatprep.subr.bf16.mxu0 0
    %247 = vmatpush1.bf16.msra.mxu0 0
    %248 = vmatprep.subr.bf16.mxu0 0
    %249 = vmatpush1.bf16.msra.mxu0 0
    %250 = vmatprep.subr.bf16.mxu0 0
    %251 = vmatpush1.bf16.msra.mxu0 0
    %252 = vmatprep.subr.bf16.mxu0 0
    %253 = vmatpush1.bf16.msra.mxu0 0
    %254 = vmatprep.subr.bf16.mxu0 0
    %255 = vmatpush1.bf16.msra.mxu0 0
    %256 = vmatprep.subr.bf16.mxu0 0
    %257 = vmatpush1.bf16.msra.mxu0 0
    %258 = vmatprep.mubr.bf16.mxu0 0
    %259 = vmatmul.mubr.bf16.gmra.mrb[0].mxu0 %v161
    %v260 = vpop.f32.mrb[0].mxu0
    %v261 = vadd.f32 0.0, %v260
    %v262 = vpop.f32.mrb[0].mxu0
    %v263 = vpop.f32.mrb[0].mxu0
    %v264 = vpop.f32.mrb[0].mxu0
    %265 = vdwg.mxu0
    %v266 = vpack.c.bf16 %v261, %v261
    %v267 = vpack.c.bf16 %v44, %v44
    %v269 = vpack.i.b16 %v267, %v267
    %v271 = vlaneseq
    %v272 = vshrl.u32 %v271, 7
    %v273 = vsub.s32 0, %v272
    %v274 = vrot.slane %v269, %v273
    %v275 = vadd.bf16 %v266, %v274
    %v276 = vmax.bf16 %v275, 0
    %v277 = vpack.c.bf16 %v45, %v45
    %279 = vset.pattern.permute.xlu0 0
    %280 = vperm.xlu0 %279, %v46
    %v281 = vpop.permute.xlu0 %280
    %283 = vmatprep.subr.bf16.mxu0 0
    %284 = vmatpush1.bf16.xpose.msra.mxu0 %v276
    %285 = vmatprep.subr.bf16.mxu0 0
    %286 = vmatpush1.bf16.xpose.msra.mxu0 0
    %287 = vmatprep.subr.bf16.mxu0 0
    %288 = vmatpush1.bf16.xpose.msra.mxu0 0
    %289 = vmatprep.subr.bf16.mxu0 0
    %290 = vmatpush1.bf16.xpose.msra.mxu0 0
    %291 = vmatprep.subr.bf16.mxu0 0
    %292 = vmatpush1.bf16.xpose.msra.mxu0 0
    %293 = vmatprep.subr.bf16.mxu0 0
    %294 = vmatpush1.bf16.xpose.msra.mxu0 0
    %295 = vmatprep.subr.bf16.mxu0 0
    %296 = vmatpush1.bf16.xpose.msra.mxu0 0
    %297 = vmatprep.subr.bf16.mxu0 0
    %298 = vmatpush1.bf16.xpose.msra.mxu0 0
    %299 = vmatprep.subr.bf16.mxu0 0
    %300 = vmatpush1.bf16.xpose.msra.mxu0 0
    %301 = vmatprep.subr.bf16.mxu0 0
    %302 = vmatpush1.bf16.xpose.msra.mxu0 0
    %303 = vmatprep.subr.bf16.mxu0 0
    %304 = vmatpush1.bf16.xpose.msra.mxu0 0
    %305 = vmatprep.subr.bf16.mxu0 0
    %306 = vmatpush1.bf16.xpose.msra.mxu0 0
    %307 = vmatprep.subr.bf16.mxu0 0
    %308 = vmatpush1.bf16.xpose.msra.mxu0 0
    %309 = vmatprep.subr.bf16.mxu0 0
    %310 = vmatpush1.bf16.xpose.msra.mxu0 0
    %311 = vmatprep.subr.bf16.mxu0 0
    %312 = vmatpush1.bf16.xpose.msra.mxu0 0
    %313 = vmatprep.subr.bf16.mxu0 0
    %314 = vmatpush1.bf16.xpose.msra.mxu0 0
    %315 = vmatprep.mubr.bf16.mxu0 0
    %316 = vmatmul.mubr.bf16.gmra.mrb[0].mxu0 %v277
    %v317 = vpop.f32.mrb[0].mxu0
    %v318 = vadd.f32 %v281, %v317
    %v319 = vpop.f32.mrb[0].mxu0
    %v320 = vpop.f32.mrb[0].mxu0
    %v321 = vpop.f32.mrb[0].mxu0
    %322 = vdwg.mxu0
    %vm323 = vcmask 57344
    %324 = vst.msk [vmem:[#allocation5] sm:$0x1] %vm323, %v318
    // Predicated region
    $region30: #{tpu_custom_call.1} parent=1 // pred_check
      _
    $region31: #{tpu_custom_call.1} parent=1 // pred_check_branch
      %326 = sbr.rel (0) target = $region33
    $region32: #{tpu_custom_call.1} parent=1 // pred_region
      %s328 = ssub.s32 16, 16
      %329 = vsyncadd [#allocation4], %s328
      %s331 = sshll.u32 [#allocation5], 4
      %s332 = int_to_ptr.vmem [resolvable:$true] %s331
      %334 = dma.vmem_to_hbm [thread:$0]  %s332, 16, %s6, [#allocation4]
    $region33: #{tpu_custom_call.1} parent=1 // pred_fallthru
      _
    // Predicated region
    $region34: #{tpu_custom_call.1} parent=1 // pred_check
      _
    $region35: #{tpu_custom_call.1} parent=1 // pred_check_branch
      %336 = sbr.rel (0) target = $region37
    $region36: #{tpu_custom_call.1} parent=1 // pred_region
      %337 = dma.done [#allocation4], 16
    $region37: #{tpu_custom_call.1} parent=1 // pred_fallthru
      _
    %338 = vsyncpa [#allocation3], 1
    %339 = vsyncpa [#allocation4], 1

</llo_original>
